<compile_context>
chip_gen: v7x
topology: tpu7x:2x2x1
jax: 0.10.0
libtpu: 0.0.40
codegen_flags: <defaults>
</compile_context>

<pallas_src>
import jax
import jax.numpy as jnp
import numpy as np
from jax.experimental import pallas as pl
from jax.experimental.pallas import tpu as pltpu


def _legnn_kernel(al, residual):
    """Kernel body with module hyper-params closed over."""
    al = float(al)
    residual = bool(residual)

    def kernel(xk_ref, a_ref, h0_ref, yr_ref, yct_ref, xr_ref, out_ref,
               acc_ref, l1_ref):
        k = pl.program_id(1)

        @pl.when(k == 0)
        def _():
            acc_ref[...] = jnp.zeros_like(acc_ref)
            l1_ref[...] = jnp.zeros_like(l1_ref)

        # mask tile = y[rows] @ y[cols].T  (y.T built in the wrapper -> NN dot)
        mask = jnp.dot(yr_ref[...], yct_ref[...],
                       preferred_element_type=jnp.float32)          # [TM, TK]
        adj = a_ref[...] * mask                                      # [TM, TK]

        # Partial row-L1 (normalization deferred past the matmul).
        l1_ref[...] += jnp.sum(jnp.abs(adj), axis=1, keepdims=True)  # [TM, 1]
        # Partial un-normalized support.
        acc_ref[...] += jnp.dot(adj, xk_ref[...],
                                preferred_element_type=jnp.float32)  # [TM, F]

        @pl.when(k == pl.num_programs(1) - 1)
        def _():
            denom = jnp.maximum(l1_ref[...], jnp.float32(1e-12))     # [TM, 1]
            support = acc_ref[...] / denom       # (adj@x)/d == (adj/d)@x
            out = (1.0 - al) * support + al * h0_ref[...]
            if residual:
                out = out + 0.1 * xr_ref[...]
            out_ref[...] = out.astype(out_ref.dtype)

    return kernel


def _pick_tile(n_pad, target):
    """Largest multiple of 128 <= target that divides n_pad (n_pad % 128 == 0)."""
    t = min(target, n_pad)
    while n_pad % t:
        t -= 128
    return t


def _pad2(x, rows, cols):
    pr, pc = rows - x.shape[0], cols - x.shape[1]
    if pr or pc:
        x = jnp.pad(x, ((0, pr), (0, pc)))
    return x


def graph_convolution_legnn(x, a_dense, h0, y, *, al=0.5, residual=False,
                            tm_target=256, tk_target=512):
    """Pallas wrapper: pads node/feature dims to (128-aligned) tiles, runs the
    tiled kernel, slices the result back to [N, F]."""
    n, f = x.shape
    c = y.shape[1]
    assert a_dense.shape == (n, n)
    assert h0.shape == (n, f)
    assert y.shape[0] == n

    n_pad = pl.cdiv(n, 128) * 128
    f_pad = pl.cdiv(f, 128) * 128
    tm = _pick_tile(n_pad, tm_target)
    tk = _pick_tile(n_pad, tk_target)

    x_p = _pad2(x.astype(jnp.float32), n_pad, f_pad)
    a_p = _pad2(a_dense.astype(jnp.float32), n_pad, n_pad)
    h0_p = _pad2(h0.astype(jnp.float32), n_pad, f_pad)
    y_p = _pad2(y.astype(jnp.float32), n_pad, c)
    y_t = y_p.T                              # [C, N_pad], transposed once outside

    grid = (n_pad // tm, n_pad // tk)
    kernel = _legnn_kernel(al, residual)

    flops = 2 * n_pad * n_pad * (c + f_pad)
    bytes_accessed = 4 * (n_pad * n_pad + 4 * n_pad * f_pad + 2 * n_pad * c)

    out_p = pl.pallas_call(
        kernel,
        out_shape=jax.ShapeDtypeStruct((n_pad, f_pad), jnp.float32),
        grid=grid,
        in_specs=[
            pl.BlockSpec((tk, f_pad), lambda i, k: (k, 0)),   # x  (reduction rows)
            pl.BlockSpec((tm, tk), lambda i, k: (i, k)),      # A  tile (O(N^2) stream)
            pl.BlockSpec((tm, f_pad), lambda i, k: (i, 0)),   # h0 (row tile)
            pl.BlockSpec((tm, c), lambda i, k: (i, 0)),       # y  rows
            pl.BlockSpec((c, tk), lambda i, k: (0, k)),       # y.T cols
            pl.BlockSpec((tm, f_pad), lambda i, k: (i, 0)),   # x  rows (residual)
        ],
        out_specs=pl.BlockSpec((tm, f_pad), lambda i, k: (i, 0)),
        scratch_shapes=[
            pltpu.VMEM((tm, f_pad), jnp.float32),   # support accumulator
            pltpu.VMEM((tm, 1), jnp.float32),       # row-L1 accumulator
        ],
        compiler_params=pltpu.CompilerParams(
            dimension_semantics=("parallel", "arbitrary"),
            vmem_limit_bytes=48 * 1024 * 1024,
        ),
        cost_estimate=pl.CostEstimate(
            flops=flops, transcendentals=0, bytes_accessed=bytes_accessed),
    )(x_p, a_p, h0_p, y_p, y_t, x_p)

    return out_p[:n, :f].astype(x.dtype)


def _reference_np(x, a_dense, h0, y, al, residual):
    """float64 numpy reference mirroring the PyTorch forward exactly."""
    x64 = np.asarray(x, np.float64)
    a64 = np.asarray(a_dense, np.float64)
    h64 = np.asarray(h0, np.float64)
    y64 = np.asarray(y, np.float64)
    mask = y64 @ y64.T
    adj = a64 * mask
    denom = np.maximum(np.abs(adj).sum(axis=1, keepdims=True), 1e-12)
    adj = adj / denom
    support = adj @ x64
    out = (1.0 - al) * support + al * h64
    if residual:
        out = out + 0.1 * x64
    return out


if __name__ == "__main__":
    key = jax.random.PRNGKey(0)
    k1, k2, k3, k4, k5 = jax.random.split(key, 5)

    N, F, C = 16, 32, 8          # nodes, feature dim, num classes

    # Inputs are quantized so every MXU operand (x and adj = A*mask) is exactly
    # bf16-representable -> kernel result is matmul-precision-mode independent
    # and can be checked tightly against the float64 reference.
    x = jax.random.normal(k1, (N, F), dtype=jnp.float32)
    x = x.astype(jnp.bfloat16).astype(jnp.float32)
    h0 = jax.random.normal(k2, (N, F), dtype=jnp.float32)
    h0 = h0.astype(jnp.bfloat16).astype(jnp.float32)
    y = (jax.random.uniform(k3, (N, C)) > 0.5).astype(jnp.float32)

    adj_pattern = (jax.random.uniform(k4, (N, N)) > 0.7).astype(jnp.float32)
    adj_vals = jnp.round(jax.random.uniform(k5, (N, N), dtype=jnp.float32) * 16.0) / 16.0
    a_dense = adj_pattern * adj_vals

    for al, residual in ((0.1, False), (0.5, True)):
        out = graph_convolution_legnn(x, a_dense, h0, y, al=al, residual=residual)
        out = jax.block_until_ready(out)
        ref = _reference_np(x, a_dense, h0, y, al, residual)
        assert np.allclose(np.asarray(out), ref, atol=1e-5, rtol=1e-5), \
            f"mismatch vs reference (al={al}, residual={residual})"

    print("KERNEL_OK")
</pallas_src>

<mosaic_0001>
module attributes {stable_mosaic.version = 11 : i64} {
  func.func @kernel(%arg0: i32, %arg1: i32, %arg2: memref<128x128xf32, #tpu.memory_space<vmem>>, %arg3: memref<128x128xf32, #tpu.memory_space<vmem>>, %arg4: memref<128x128xf32, #tpu.memory_space<vmem>>, %arg5: memref<128x8xf32, #tpu.memory_space<vmem>>, %arg6: memref<8x128xf32, #tpu.memory_space<vmem>>, %arg7: memref<128x128xf32, #tpu.memory_space<vmem>>, %arg8: memref<128x128xf32, #tpu.memory_space<vmem>>, %arg9: memref<128x128xf32, #tpu.memory_space<vmem>>, %arg10: memref<128x1xf32, #tpu.memory_space<vmem>>) attributes {dimension_semantics = [#tpu.dimension_semantics<parallel>, #tpu.dimension_semantics<arbitrary>], iteration_bounds = array<i64: 1, 1>, scalar_prefetch = 0 : i64, scratch_operands = 2 : i64, tpu.core_type = #tpu.core_type<tc>, window_params = [{transform_indices = @transform_0, window_bounds = array<i64: 128, 128>}, {transform_indices = @transform_1, window_bounds = array<i64: 128, 128>}, {transform_indices = @transform_2, window_bounds = array<i64: 128, 128>}, {transform_indices = @transform_3, window_bounds = array<i64: 128, 8>}, {transform_indices = @transform_4, window_bounds = array<i64: 8, 128>}, {transform_indices = @transform_5, window_bounds = array<i64: 128, 128>}, {transform_indices = @transform_6, window_bounds = array<i64: 128, 128>}]} {
    %c0_i32 = arith.constant 0 : i32
    %0 = arith.cmpi eq, %arg1, %c0_i32 : i32
    %1 = arith.extui %0 : i1 to i32
    %c0_i32_0 = arith.constant 0 : i32
    %2 = arith.cmpi ne, %1, %c0_i32_0 : i32
    scf.if %2 {
      %cst_20 = arith.constant 0.000000e+00 : f32
      %22 = vector.broadcast %cst_20 : f32 to vector<128x128xf32>
      %c0_21 = arith.constant 0 : index
      %c0_22 = arith.constant 0 : index
      %23 = vector.load %arg9[%c0_21, %c0_22] : memref<128x128xf32, #tpu.memory_space<vmem>>, vector<128x128xf32>
      tpu.vector_store %arg9[%c0_21, %c0_22], %22 {strides = array<i32>} : memref<128x128xf32, #tpu.memory_space<vmem>>, vector<128x128xf32>,
      %cst_23 = arith.constant 0.000000e+00 : f32
      %24 = vector.broadcast %cst_23 : f32 to vector<128x1xf32>
      %c0_24 = arith.constant 0 : index
      %c0_25 = arith.constant 0 : index
      %25 = vector.load %arg10[%c0_24, %c0_25] : memref<128x1xf32, #tpu.memory_space<vmem>>, vector<128x1xf32>
      tpu.vector_store %arg10[%c0_24, %c0_25], %24 {strides = array<i32>} : memref<128x1xf32, #tpu.memory_space<vmem>>, vector<128x1xf32>,
    } else {
    }
    %c0 = arith.constant 0 : index
    %c0_1 = arith.constant 0 : index
    %3 = vector.load %arg5[%c0, %c0_1] : memref<128x8xf32, #tpu.memory_space<vmem>>, vector<128x8xf32>
    %c0_2 = arith.constant 0 : index
    %c0_3 = arith.constant 0 : index
    %4 = vector.load %arg6[%c0_2, %c0_3] : memref<8x128xf32, #tpu.memory_space<vmem>>, vector<8x128xf32>
    %cst = arith.constant dense<0.000000e+00> : vector<128x128xf32>
    %5 = tpu.matmul %3, %4, %cst {dimension_numbers = #tpu.dot_dimension_numbers<[1], [0], [0], [1], [0, 0, 1, 1], [], []>} : vector<128x8xf32>, vector<8x128xf32>, vector<128x128xf32> -> vector<128x128xf32>
    %c0_4 = arith.constant 0 : index
    %c0_5 = arith.constant 0 : index
    %6 = vector.load %arg3[%c0_4, %c0_5] : memref<128x128xf32, #tpu.memory_space<vmem>>, vector<128x128xf32>
    %7 = arith.mulf %6, %5 : vector<128x128xf32>
    %c0_6 = arith.constant 0 : index
    %c0_7 = arith.constant 0 : index
    %8 = vector.load %arg10[%c0_6, %c0_7] : memref<128x1xf32, #tpu.memory_space<vmem>>, vector<128x1xf32>
    %9 = math.absf %7 : vector<128x128xf32>
    %cst_8 = arith.constant dense<0.000000e+00> : vector<128xf32>
    %10 = vector.multi_reduction <add>, %9, %cst_8 [1] : vector<128x128xf32> to vector<128xf32>
    %11 = vector.shape_cast %10 : vector<128xf32> to vector<128x1xf32>
    %12 = arith.addf %8, %11 : vector<128x1xf32>
    %c0_9 = arith.constant 0 : index
    %c0_10 = arith.constant 0 : index
    %13 = vector.load %arg10[%c0_9, %c0_10] : memref<128x1xf32, #tpu.memory_space<vmem>>, vector<128x1xf32>
    tpu.vector_store %arg10[%c0_9, %c0_10], %12 {strides = array<i32>} : memref<128x1xf32, #tpu.memory_space<vmem>>, vector<128x1xf32>,
    %c0_11 = arith.constant 0 : index
    %c0_12 = arith.constant 0 : index
    %14 = vector.load %arg9[%c0_11, %c0_12] : memref<128x128xf32, #tpu.memory_space<vmem>>, vector<128x128xf32>
    %c0_13 = arith.constant 0 : index
    %c0_14 = arith.constant 0 : index
    %15 = vector.load %arg2[%c0_13, %c0_14] : memref<128x128xf32, #tpu.memory_space<vmem>>, vector<128x128xf32>
    %cst_15 = arith.constant dense<0.000000e+00> : vector<128x128xf32>
    %16 = tpu.matmul %7, %15, %cst_15 {dimension_numbers = #tpu.dot_dimension_numbers<[1], [0], [0], [1], [0, 0, 1, 1], [], []>} : vector<128x128xf32>, vector<128x128xf32>, vector<128x128xf32> -> vector<128x128xf32>
    %17 = arith.addf %14, %16 : vector<128x128xf32>
    %c0_16 = arith.constant 0 : index
    %c0_17 = arith.constant 0 : index
    %18 = vector.load %arg9[%c0_16, %c0_17] : memref<128x128xf32, #tpu.memory_space<vmem>>, vector<128x128xf32>
    tpu.vector_store %arg9[%c0_16, %c0_17], %17 {strides = array<i32>} : memref<128x128xf32, #tpu.memory_space<vmem>>, vector<128x128xf32>,
    %c0_i32_18 = arith.constant 0 : i32
    %19 = arith.cmpi eq, %arg1, %c0_i32_18 : i32
    %20 = arith.extui %19 : i1 to i32
    %c0_i32_19 = arith.constant 0 : i32
    %21 = arith.cmpi ne, %20, %c0_i32_19 : i32
    scf.if %21 {
      %c0_20 = arith.constant 0 : index
      %c0_21 = arith.constant 0 : index
      %22 = vector.load %arg10[%c0_20, %c0_21] : memref<128x1xf32, #tpu.memory_space<vmem>>, vector<128x1xf32>
      %cst_22 = arith.constant 9.99999996E-13 : f32
      %23 = vector.broadcast %cst_22 : f32 to vector<128x1xf32>
      %24 = arith.maximumf %22, %23 : vector<128x1xf32>
      %c0_23 = arith.constant 0 : index
      %c0_24 = arith.constant 0 : index
      %25 = vector.load %arg9[%c0_23, %c0_24] : memref<128x128xf32, #tpu.memory_space<vmem>>, vector<128x128xf32>
      %26 = vector.broadcast %24 : vector<128x1xf32> to vector<128x128xf32>
      %27 = arith.divf %25, %26 : vector<128x128xf32>
      %cst_25 = arith.constant 0.899999976 : f32
      %28 = vector.broadcast %cst_25 : f32 to vector<128x128xf32>
      %29 = arith.mulf %28, %27 : vector<128x128xf32>
      %c0_26 = arith.constant 0 : index
      %c0_27 = arith.constant 0 : index
      %30 = vector.load %arg4[%c0_26, %c0_27] : memref<128x128xf32, #tpu.memory_space<vmem>>, vector<128x128xf32>
      %cst_28 = arith.constant 1.000000e-01 : f32
      %31 = vector.broadcast %cst_28 : f32 to vector<128x128xf32>
      %32 = arith.mulf %31, %30 : vector<128x128xf32>
      %33 = arith.addf %29, %32 : vector<128x128xf32>
      %c0_29 = arith.constant 0 : index
      %c0_30 = arith.constant 0 : index
      %34 = vector.load %arg8[%c0_29, %c0_30] : memref<128x128xf32, #tpu.memory_space<vmem>>, vector<128x128xf32>
      tpu.vector_store %arg8[%c0_29, %c0_30], %33 {strides = array<i32>} : memref<128x128xf32, #tpu.memory_space<vmem>>, vector<128x128xf32>,
    } else {
    }
    return
  }
  func.func @transform_0(%arg0: i32, %arg1: i32) -> (i32, i32) {
    %c0_i32 = arith.constant 0 : i32
    %c0_i32_0 = arith.constant 0 : i32
    return %arg1, %c0_i32 : i32, i32
  }
  func.func @transform_1(%arg0: i32, %arg1: i32) -> (i32, i32) {
    %c0_i32 = arith.constant 0 : i32
    return %arg0, %arg1 : i32, i32
  }
  func.func @transform_2(%arg0: i32, %arg1: i32) -> (i32, i32) {
    %c0_i32 = arith.constant 0 : i32
    %c0_i32_0 = arith.constant 0 : i32
    return %arg0, %c0_i32 : i32, i32
  }
  func.func @transform_3(%arg0: i32, %arg1: i32) -> (i32, i32) {
    %c0_i32 = arith.constant 0 : i32
    %c0_i32_0 = arith.constant 0 : i32
    return %arg0, %c0_i32 : i32, i32
  }
  func.func @transform_4(%arg0: i32, %arg1: i32) -> (i32, i32) {
    %c0_i32 = arith.constant 0 : i32
    %c0_i32_0 = arith.constant 0 : i32
    return %c0_i32, %arg1 : i32, i32
  }
  func.func @transform_5(%arg0: i32, %arg1: i32) -> (i32, i32) {
    %c0_i32 = arith.constant 0 : i32
    %c0_i32_0 = arith.constant 0 : i32
    return %arg0, %c0_i32 : i32, i32
  }
  func.func @transform_6(%arg0: i32, %arg1: i32) -> (i32, i32) {
    %c0_i32 = arith.constant 0 : i32
    %c0_i32_0 = arith.constant 0 : i32
    return %arg0, %c0_i32 : i32, i32
  }
}

</mosaic_0001>

<llo_original>
// kernel: tpu_custom_call.1
$region0: #{tpu_custom_call.1}
  #allocation0 [shape = 'u32[]', space=smem, size = 0x4, offset = 0x4, fixed_abs, tag = 'smem constant byte address 0x4 - core index']
  #allocation1 [shape = 'u32[144,128]{1,0:T(1,128)}', space=vmem, size = 0x12000, scoped, tag = 'internal scratch']
  #allocation2 [shape = 'f32[128,128]{1,0:T(8,128)}', space=vmem, size = 0x10000, scoped, tag = 'scratch operand']
  #allocation3 [shape = 'f32[128,1]{1,0:T(8,128)}', space=vmem, size = 0x10000, scoped, tag = 'scratch operand']
  %s0 = inlined_call_operand.vmem [shape: f32[128,128], index: 0, kind: input, shape index: {}]
  %s1 = inlined_call_operand.hbm [shape: f32[128,128], index: 1, kind: input, shape index: {}]
  %s2 = inlined_call_operand.hbm [shape: f32[128,128], index: 2, kind: input, shape index: {}]
  %s3 = inlined_call_operand.vmem [shape: f32[128,8], index: 3, kind: input, shape index: {}]
  %s4 = inlined_call_operand.vmem [shape: f32[8,128], index: 4, kind: input, shape index: {}]
  %s5 = inlined_call_operand.hbm [shape: f32[128,128], index: 5, kind: input, shape index: {}]
  %s6 = inlined_call_operand.hbm [shape: f32[128,128], index: 6, kind: output, shape index: {}]
  %s7 = sld [smem:[#allocation0]]
  $region54: #{tpu_custom_call.1} parent=0
    _
  %s9 = ssub.s32 1, %s7
  %s10 = scalar_select 0, %s9, %s7
  $region1: #{tpu_custom_call.1} parent=0
    #allocation4 [shape = 'u8[65536]{0}', space=vmem, size = 0x10000, scoped, tag = 'input window, operand 1, single buffered']
    #allocation5 [shape = 's32[1]{0}', space=sflag, size = 0x4, scoped, tag = 'scoped memory for tpu_custom_call.1']
    #allocation6 [shape = 's32[1]{0}', space=sflag, size = 0x4, scoped, tag = 'scoped memory for tpu_custom_call.1']
    #allocation7 [shape = 'u8[65536]{0}', space=vmem, size = 0x10000, scoped, tag = 'input window, operand 2, single buffered']
    #allocation8 [shape = 's32[1]{0}', space=sflag, size = 0x4, scoped, tag = 'scoped memory for tpu_custom_call.1']
    #allocation9 [shape = 'u8[65536]{0}', space=vmem, size = 0x10000, scoped, tag = 'input window, operand 5, single buffered']
    #allocation10 [shape = 'u8[65536]{0}', space=vmem, size = 0x10000, scoped, tag = 'output window, operand 0, single buffered']
    %11 = vsyncpa [#allocation5], 0
    %12 = vsyncpa [#allocation8], 0
    %13 = vsyncpa [#allocation6], 0
    // Predicated region
    $region2: #{tpu_custom_call.1} parent=1 // pred_check
      _
    $region3: #{tpu_custom_call.1} parent=1 // pred_check_branch
      %15 = sbr.rel (0) target = $region5
    $region4: #{tpu_custom_call.1} parent=1 // pred_region
      _
    $region5: #{tpu_custom_call.1} parent=1 // pred_fallthru
      _
    // Predicated region
    $region6: #{tpu_custom_call.1} parent=1 // pred_check
      _
    $region7: #{tpu_custom_call.1} parent=1 // pred_check_branch
      %17 = sbr.rel (0) target = $region9
    $region8: #{tpu_custom_call.1} parent=1 // pred_region
      %s19 = ssub.s32 2048, 2048
      %20 = vsyncadd [#allocation5], %s19
      %s21 = sshll.u32 [#allocation4], 4
      %s22 = int_to_ptr.vmem [resolvable:$true] %s21
      %27 = dma.hbm_to_vmem [thread:$0]  %s1, 2048, %s22, [#allocation5], 128, 128, 8
    $region9: #{tpu_custom_call.1} parent=1 // pred_fallthru
      _
    // Predicated region
    $region10: #{tpu_custom_call.1} parent=1 // pred_check
      _
    $region11: #{tpu_custom_call.1} parent=1 // pred_check_branch
      %29 = sbr.rel (0) target = $region13
    $region12: #{tpu_custom_call.1} parent=1 // pred_region
      %s31 = ssub.s32 2048, 2048
      %32 = vsyncadd [#allocation8], %s31
      %s33 = sshll.u32 [#allocation7], 4
      %s34 = int_to_ptr.vmem [resolvable:$true] %s33
      %39 = dma.hbm_to_vmem [thread:$0]  %s2, 2048, %s34, [#allocation8], 128, 128, 8
    $region13: #{tpu_custom_call.1} parent=1 // pred_fallthru
      _
    // Predicated region
    $region14: #{tpu_custom_call.1} parent=1 // pred_check
      _
    $region15: #{tpu_custom_call.1} parent=1 // pred_check_branch
      %41 = sbr.rel (0) target = $region17
    $region16: #{tpu_custom_call.1} parent=1 // pred_region
      _
    $region17: #{tpu_custom_call.1} parent=1 // pred_fallthru
      _
    // Predicated region
    $region18: #{tpu_custom_call.1} parent=1 // pred_check
      _
    $region19: #{tpu_custom_call.1} parent=1 // pred_check_branch
      %43 = sbr.rel (0) target = $region21
    $region20: #{tpu_custom_call.1} parent=1 // pred_region
      _
    $region21: #{tpu_custom_call.1} parent=1 // pred_fallthru
      _
    // Predicated region
    $region22: #{tpu_custom_call.1} parent=1 // pred_check
      _
    $region23: #{tpu_custom_call.1} parent=1 // pred_check_branch
      %45 = sbr.rel (0) target = $region25
    $region24: #{tpu_custom_call.1} parent=1 // pred_region
      %s47 = ssub.s32 2048, 2048
      %48 = vsyncadd [#allocation8], %s47
      %s49 = sshll.u32 [#allocation9], 4
      %s50 = int_to_ptr.vmem [resolvable:$true] %s49
      %55 = dma.hbm_to_vmem [thread:$0]  %s5, 2048, %s50, [#allocation8], 128, 128, 8
    $region25: #{tpu_custom_call.1} parent=1 // pred_fallthru
      _
    // Predicated region
    $region26: #{tpu_custom_call.1} parent=1 // pred_check
      _
    $region27: #{tpu_custom_call.1} parent=1 // pred_check_branch
      %57 = sbr.rel (0) target = $region29
    $region28: #{tpu_custom_call.1} parent=1 // pred_region
      %58 = dma.done [#allocation5], 2048
    $region29: #{tpu_custom_call.1} parent=1 // pred_fallthru
      _
    // Predicated region
    $region30: #{tpu_custom_call.1} parent=1 // pred_check
      _
    $region31: #{tpu_custom_call.1} parent=1 // pred_check_branch
      %60 = sbr.rel (0) target = $region33
    $region32: #{tpu_custom_call.1} parent=1 // pred_region
      %61 = dma.done [#allocation8], 2048
    $region33: #{tpu_custom_call.1} parent=1 // pred_fallthru
      _
    // Predicated region
    $region34: #{tpu_custom_call.1} parent=1 // pred_check
      _
    $region35: #{tpu_custom_call.1} parent=1 // pred_check_branch
      %63 = sbr.rel (0) target = $region37
    $region36: #{tpu_custom_call.1} parent=1 // pred_region
      %64 = dma.done [#allocation8], 2048
    $region37: #{tpu_custom_call.1} parent=1 // pred_fallthru
      _
    %p65 = scmp.eq.s32.totalorder 0, 0
    // Predicated region
    $region38: #{tpu_custom_call.1} parent=1 // pred_check
      %p66 = pneg %p65
    $region39: #{tpu_custom_call.1} parent=1 // pred_check_branch
      %68 = sbr.rel (%p66) target = $region41
    $region40: #{tpu_custom_call.1} parent=1 // pred_region
      %69 = vst [vmem:[#allocation2] sm:$0xff] 0.0
      %70 = vst [vmem:[#allocation2 + $0x8] sm:$0xff] 0.0
      %71 = vst [vmem:[#allocation2 + $0x10] sm:$0xff] 0.0
      %72 = vst [vmem:[#allocation2 + $0x18] sm:$0xff] 0.0
      %73 = vst [vmem:[#allocation2 + $0x20] sm:$0xff] 0.0
      %74 = vst [vmem:[#allocation2 + $0x28] sm:$0xff] 0.0
      %75 = vst [vmem:[#allocation2 + $0x30] sm:$0xff] 0.0
      %76 = vst [vmem:[#allocation2 + $0x38] sm:$0xff] 0.0
      %77 = vst [vmem:[#allocation2 + $0x40] sm:$0xff] 0.0
      %78 = vst [vmem:[#allocation2 + $0x48] sm:$0xff] 0.0
      %79 = vst [vmem:[#allocation2 + $0x50] sm:$0xff] 0.0
      %80 = vst [vmem:[#allocation2 + $0x58] sm:$0xff] 0.0
      %81 = vst [vmem:[#allocation2 + $0x60] sm:$0xff] 0.0
      %82 = vst [vmem:[#allocation2 + $0x68] sm:$0xff] 0.0
      %83 = vst [vmem:[#allocation2 + $0x70] sm:$0xff] 0.0
      %84 = vst [vmem:[#allocation2 + $0x78] sm:$0xff] 0.0
      %vm85 = vcmask 7168
      %86 = vst.msk [vmem:[#allocation3] sm:$0xff] %vm85, 0.0
      %87 = vst.msk [vmem:[#allocation3 + $0x8] sm:$0xff] %vm85, 0.0
      %88 = vst.msk [vmem:[#allocation3 + $0x10] sm:$0xff] %vm85, 0.0
      %89 = vst.msk [vmem:[#allocation3 + $0x18] sm:$0xff] %vm85, 0.0
      %90 = vst.msk [vmem:[#allocation3 + $0x20] sm:$0xff] %vm85, 0.0
      %91 = vst.msk [vmem:[#allocation3 + $0x28] sm:$0xff] %vm85, 0.0
      %92 = vst.msk [vmem:[#allocation3 + $0x30] sm:$0xff] %vm85, 0.0
      %93 = vst.msk [vmem:[#allocation3 + $0x38] sm:$0xff] %vm85, 0.0
      %94 = vst.msk [vmem:[#allocation3 + $0x40] sm:$0xff] %vm85, 0.0
      %95 = vst.msk [vmem:[#allocation3 + $0x48] sm:$0xff] %vm85, 0.0
      %96 = vst.msk [vmem:[#allocation3 + $0x50] sm:$0xff] %vm85, 0.0
      %97 = vst.msk [vmem:[#allocation3 + $0x58] sm:$0xff] %vm85, 0.0
      %98 = vst.msk [vmem:[#allocation3 + $0x60] sm:$0xff] %vm85, 0.0
      %99 = vst.msk [vmem:[#allocation3 + $0x68] sm:$0xff] %vm85, 0.0
      %100 = vst.msk [vmem:[#allocation3 + $0x70] sm:$0xff] %vm85, 0.0
      %101 = vst.msk [vmem:[#allocation3 + $0x78] sm:$0xff] %vm85, 0.0
    $region41: #{tpu_custom_call.1} parent=1 // pred_fallthru
      _
    %v102 = vld [vmem:[%s3] sm:$0xff]
    %v103 = vld [vmem:[%s3 + $0x8] sm:$0xff]
    %v104 = vld [vmem:[%s3 + $0x10] sm:$0xff]
    %v105 = vld [vmem:[%s3 + $0x18] sm:$0xff]
    %v106 = vld [vmem:[%s3 + $0x20] sm:$0xff]
    %v107 = vld [vmem:[%s3 + $0x28] sm:$0xff]
    %v108 = vld [vmem:[%s3 + $0x30] sm:$0xff]
    %v109 = vld [vmem:[%s3 + $0x38] sm:$0xff]
    %v110 = vld [vmem:[%s3 + $0x40] sm:$0xff]
    %v111 = vld [vmem:[%s3 + $0x48] sm:$0xff]
    %v112 = vld [vmem:[%s3 + $0x50] sm:$0xff]
    %v113 = vld [vmem:[%s3 + $0x58] sm:$0xff]
    %v114 = vld [vmem:[%s3 + $0x60] sm:$0xff]
    %v115 = vld [vmem:[%s3 + $0x68] sm:$0xff]
    %v116 = vld [vmem:[%s3 + $0x70] sm:$0xff]
    %v117 = vld [vmem:[%s3 + $0x78] sm:$0xff]
    %v118 = vld [vmem:[%s4] sm:$0xff]
    %vm119 = vcmask 64512
    %v121 = vsel %vm119, %v102, 0
    %v124 = vsel %vm119, %v103, 0
    %v127 = vsel %vm119, %v104, 0
    %v130 = vsel %vm119, %v105, 0
    %v133 = vsel %vm119, %v106, 0
    %v136 = vsel %vm119, %v107, 0
    %v139 = vsel %vm119, %v108, 0
    %v142 = vsel %vm119, %v109, 0
    %v145 = vsel %vm119, %v110, 0
    %v148 = vsel %vm119, %v111, 0
    %v151 = vsel %vm119, %v112, 0
    %v154 = vsel %vm119, %v113, 0
    %v157 = vsel %vm119, %v114, 0
    %v160 = vsel %vm119, %v115, 0
    %v163 = vsel %vm119, %v116, 0
    %v166 = vsel %vm119, %v117, 0
    %168 = vmatprep.subr.mxu0 0.0
    %169 = vmatpush1.msra.mxu0 %v118
    %170 = vmatprep.subr.mxu0 0.0
    %171 = vmatpush1.msra.mxu0 0.0
    %172 = vmatprep.subr.mxu0 0.0
    %173 = vmatpush1.msra.mxu0 0.0
    %174 = vmatprep.subr.mxu0 0.0
    %175 = vmatpush1.msra.mxu0 0.0
    %176 = vmatprep.subr.mxu0 0.0
    %177 = vmatpush1.msra.mxu0 0.0
    %178 = vmatprep.subr.mxu0 0.0
    %179 = vmatpush1.msra.mxu0 0.0
    %180 = vmatprep.subr.mxu0 0.0
    %181 = vmatpush1.msra.mxu0 0.0
    %182 = vmatprep.subr.mxu0 0.0
    %183 = vmatpush1.msra.mxu0 0.0
    %184 = vmatprep.subr.mxu0 0.0
    %185 = vmatpush1.msra.mxu0 0.0
    %186 = vmatprep.subr.mxu0 0.0
    %187 = vmatpush1.msra.mxu0 0.0
    %188 = vmatprep.subr.mxu0 0.0
    %189 = vmatpush1.msra.mxu0 0.0
    %190 = vmatprep.subr.mxu0 0.0
    %191 = vmatpush1.msra.mxu0 0.0
    %192 = vmatprep.subr.mxu0 0.0
    %193 = vmatpush1.msra.mxu0 0.0
    %194 = vmatprep.subr.mxu0 0.0
    %195 = vmatpush1.msra.mxu0 0.0
    %196 = vmatprep.subr.mxu0 0.0
    %197 = vmatpush1.msra.mxu0 0.0
    %198 = vmatprep.subr.mxu0 0.0
    %199 = vmatpush1.msra.mxu0 0.0
    %200 = vmatprep.subr.mxu0 0.0
    %201 = vmatpush1.msra.mxu0 0.0
    %202 = vmatprep.subr.mxu0 0.0
    %203 = vmatpush1.msra.mxu0 0.0
    %204 = vmatprep.subr.mxu0 0.0
    %205 = vmatpush1.msra.mxu0 0.0
    %206 = vmatprep.subr.mxu0 0.0
    %207 = vmatpush1.msra.mxu0 0.0
    %208 = vmatprep.subr.mxu0 0.0
    %209 = vmatpush1.msra.mxu0 0.0
    %210 = vmatprep.subr.mxu0 0.0
    %211 = vmatpush1.msra.mxu0 0.0
    %212 = vmatprep.subr.mxu0 0.0
    %213 = vmatpush1.msra.mxu0 0.0
    %214 = vmatprep.subr.mxu0 0.0
    %215 = vmatpush1.msra.mxu0 0.0
    %216 = vmatprep.subr.mxu0 0.0
    %217 = vmatpush1.msra.mxu0 0.0
    %218 = vmatprep.subr.mxu0 0.0
    %219 = vmatpush1.msra.mxu0 0.0
    %220 = vmatprep.subr.mxu0 0.0
    %221 = vmatpush1.msra.mxu0 0.0
    %222 = vmatprep.subr.mxu0 0.0
    %223 = vmatpush1.msra.mxu0 0.0
    %224 = vmatprep.subr.mxu0 0.0
    %225 = vmatpush1.msra.mxu0 0.0
    %226 = vmatprep.subr.mxu0 0.0
    %227 = vmatpush1.msra.mxu0 0.0
    %228 = vmatprep.subr.mxu0 0.0
    %229 = vmatpush1.msra.mxu0 0.0
    %230 = vmatprep.subr.mxu0 0.0
    %231 = vmatpush1.msra.mxu0 0.0
    %232 = vmatprep.mubr.f32.mxu0 0.0
    %233 = vmatmul.mubr.f32.gmra.mrb[0].mxu0 %v121
    %v234 = vpop.f32.mrb[0].mxu0
    %v235 = vadd.f32 0.0, %v234
    %v236 = vpop.f32.mrb[0].mxu0
    %237 = vmatprep.mubr.f32.mxu0 0.0
    %238 = vmatmul.mubr.f32.gmra.mrb[0].mxu0 %v124
    %v239 = vpop.f32.mrb[0].mxu0
    %v240 = vadd.f32 0.0, %v239
    %v241 = vpop.f32.mrb[0].mxu0
    %242 = vmatprep.mubr.f32.mxu0 0.0
    %243 = vmatmul.mubr.f32.gmra.mrb[0].mxu0 %v127
    %v244 = vpop.f32.mrb[0].mxu0
    %v245 = vadd.f32 0.0, %v244
    %v246 = vpop.f32.mrb[0].mxu0
    %247 = vmatprep.mubr.f32.mxu0 0.0
    %248 = vmatmul.mubr.f32.gmra.mrb[0].mxu0 %v130
    %v249 = vpop.f32.mrb[0].mxu0
    %v250 = vadd.f32 0.0, %v249
    %v251 = vpop.f32.mrb[0].mxu0
    %252 = vmatprep.mubr.f32.mxu0 0.0
    %253 = vmatmul.mubr.f32.gmra.mrb[0].mxu0 %v133
    %v254 = vpop.f32.mrb[0].mxu0
    %v255 = vadd.f32 0.0, %v254
    %v256 = vpop.f32.mrb[0].mxu0
    %257 = vmatprep.mubr.f32.mxu0 0.0
    %258 = vmatmul.mubr.f32.gmra.mrb[0].mxu0 %v136
    %v259 = vpop.f32.mrb[0].mxu0
    %v260 = vadd.f32 0.0, %v259
    %v261 = vpop.f32.mrb[0].mxu0
    %262 = vmatprep.mubr.f32.mxu0 0.0
    %263 = vmatmul.mubr.f32.gmra.mrb[0].mxu0 %v139
    %v264 = vpop.f32.mrb[0].mxu0
    %v265 = vadd.f32 0.0, %v264
    %v266 = vpop.f32.mrb[0].mxu0
    %267 = vmatprep.mubr.f32.mxu0 0.0
    %268 = vmatmul.mubr.f32.gmra.mrb[0].mxu0 %v142
    %v269 = vpop.f32.mrb[0].mxu0
    %v270 = vadd.f32 0.0, %v269
    %v271 = vpop.f32.mrb[0].mxu0
    %272 = vmatprep.mubr.f32.mxu0 0.0
    %273 = vmatmul.mubr.f32.gmra.mrb[0].mxu0 %v145
    %v274 = vpop.f32.mrb[0].mxu0
    %v275 = vadd.f32 0.0, %v274
    %v276 = vpop.f32.mrb[0].mxu0
    %277 = vmatprep.mubr.f32.mxu0 0.0
    %278 = vmatmul.mubr.f32.gmra.mrb[0].mxu0 %v148
    %v279 = vpop.f32.mrb[0].mxu0
    %v280 = vadd.f32 0.0, %v279
    %v281 = vpop.f32.mrb[0].mxu0
    %282 = vmatprep.mubr.f32.mxu0 0.0
    %283 = vmatmul.mubr.f32.gmra.mrb[0].mxu0 %v151
    %v284 = vpop.f32.mrb[0].mxu0
    %v285 = vadd.f32 0.0, %v284
    %v286 = vpop.f32.mrb[0].mxu0
    %287 = vmatprep.mubr.f32.mxu0 0.0
    %288 = vmatmul.mubr.f32.gmra.mrb[0].mxu0 %v154
    %v289 = vpop.f32.mrb[0].mxu0
    %v290 = vadd.f32 0.0, %v289
    %v291 = vpop.f32.mrb[0].mxu0
    %292 = vmatprep.mubr.f32.mxu0 0.0
    %293 = vmatmul.mubr.f32.gmra.mrb[0].mxu0 %v157
    %v294 = vpop.f32.mrb[0].mxu0
    %v295 = vadd.f32 0.0, %v294
    %v296 = vpop.f32.mrb[0].mxu0
    %297 = vmatprep.mubr.f32.mxu0 0.0
    %298 = vmatmul.mubr.f32.gmra.mrb[0].mxu0 %v160
    %v299 = vpop.f32.mrb[0].mxu0
    %v300 = vadd.f32 0.0, %v299
    %v301 = vpop.f32.mrb[0].mxu0
    %302 = vmatprep.mubr.f32.mxu0 0.0
    %303 = vmatmul.mubr.f32.gmra.mrb[0].mxu0 %v163
    %v304 = vpop.f32.mrb[0].mxu0
    %v305 = vadd.f32 0.0, %v304
    %v306 = vpop.f32.mrb[0].mxu0
    %307 = vmatprep.mubr.f32.mxu0 0.0
    %308 = vmatmul.mubr.f32.gmra.mrb[0].mxu0 %v166
    %v309 = vpop.f32.mrb[0].mxu0
    %v310 = vadd.f32 0.0, %v309
    %v311 = vpop.f32.mrb[0].mxu0
    %312 = vdwg.mxu0
    %v313 = vld [vmem:[#allocation4] sm:$0xff]
    %v314 = vld [vmem:[#allocation4 + $0x8] sm:$0xff]
    %v315 = vld [vmem:[#allocation4 + $0x10] sm:$0xff]
    %v316 = vld [vmem:[#allocation4 + $0x18] sm:$0xff]
    %v317 = vld [vmem:[#allocation4 + $0x20] sm:$0xff]
    %v318 = vld [vmem:[#allocation4 + $0x28] sm:$0xff]
    %v319 = vld [vmem:[#allocation4 + $0x30] sm:$0xff]
    %v320 = vld [vmem:[#allocation4 + $0x38] sm:$0xff]
    %v321 = vld [vmem:[#allocation4 + $0x40] sm:$0xff]
    %v322 = vld [vmem:[#allocation4 + $0x48] sm:$0xff]
    %v323 = vld [vmem:[#allocation4 + $0x50] sm:$0xff]
    %v324 = vld [vmem:[#allocation4 + $0x58] sm:$0xff]
    %v325 = vld [vmem:[#allocation4 + $0x60] sm:$0xff]
    %v326 = vld [vmem:[#allocation4 + $0x68] sm:$0xff]
    %v327 = vld [vmem:[#allocation4 + $0x70] sm:$0xff]
    %v328 = vld [vmem:[#allocation4 + $0x78] sm:$0xff]
    %v329 = vmul.f32 %v313, %v235
    %v330 = vmul.f32 %v314, %v240
    %v331 = vmul.f32 %v315, %v245
    %v332 = vmul.f32 %v316, %v250
    %v333 = vmul.f32 %v317, %v255
    %v334 = vmul.f32 %v318, %v260
    %v335 = vmul.f32 %v319, %v265
    %v336 = vmul.f32 %v320, %v270
    %v337 = vmul.f32 %v321, %v275
    %v338 = vmul.f32 %v322, %v280
    %v339 = vmul.f32 %v323, %v285
    %v340 = vmul.f32 %v324, %v290
    %v341 = vmul.f32 %v325, %v295
    %v342 = vmul.f32 %v326, %v300
    %v343 = vmul.f32 %v327, %v305
    %v344 = vmul.f32 %v328, %v310
    %v345 = vld [vmem:[#allocation3] sm:$0xff]
    %v346 = vld [vmem:[#allocation3 + $0x8] sm:$0xff]
    %v347 = vld [vmem:[#allocation3 + $0x10] sm:$0xff]
    %v348 = vld [vmem:[#allocation3 + $0x18] sm:$0xff]
    %v349 = vld [vmem:[#allocation3 + $0x20] sm:$0xff]
    %v350 = vld [vmem:[#allocation3 + $0x28] sm:$0xff]
    %v351 = vld [vmem:[#allocation3 + $0x30] sm:$0xff]
    %v352 = vld [vmem:[#allocation3 + $0x38] sm:$0xff]
    %v353 = vld [vmem:[#allocation3 + $0x40] sm:$0xff]
    %v354 = vld [vmem:[#allocation3 + $0x48] sm:$0xff]
    %v355 = vld [vmem:[#allocation3 + $0x50] sm:$0xff]
    %v356 = vld [vmem:[#allocation3 + $0x58] sm:$0xff]
    %v357 = vld [vmem:[#allocation3 + $0x60] sm:$0xff]
    %v358 = vld [vmem:[#allocation3 + $0x68] sm:$0xff]
    %v359 = vld [vmem:[#allocation3 + $0x70] sm:$0xff]
    %v360 = vld [vmem:[#allocation3 + $0x78] sm:$0xff]
    %v361 = vand.u32 2147483647, %v329
    %v362 = vand.u32 2147483647, %v330
    %v363 = vand.u32 2147483647, %v331
    %v364 = vand.u32 2147483647, %v332
    %v365 = vand.u32 2147483647, %v333
    %v366 = vand.u32 2147483647, %v334
    %v367 = vand.u32 2147483647, %v335
    %v368 = vand.u32 2147483647, %v336
    %v369 = vand.u32 2147483647, %v337
    %v370 = vand.u32 2147483647, %v338
    %v371 = vand.u32 2147483647, %v339
    %v372 = vand.u32 2147483647, %v340
    %v373 = vand.u32 2147483647, %v341
    %v374 = vand.u32 2147483647, %v342
    %v375 = vand.u32 2147483647, %v343
    %v376 = vand.u32 2147483647, %v344
    %377 = vadd.xlane.f32.xlu0 %v361
    %v378 = vpop.xlane.xlu0 %377
    %379 = vadd.xlane.f32.xlu0 %v362
    %v380 = vpop.xlane.xlu0 %379
    %381 = vadd.xlane.f32.xlu0 %v363
    %v382 = vpop.xlane.xlu0 %381
    %383 = vadd.xlane.f32.xlu0 %v364
    %v384 = vpop.xlane.xlu0 %383
    %385 = vadd.xlane.f32.xlu0 %v365
    %v386 = vpop.xlane.xlu0 %385
    %387 = vadd.xlane.f32.xlu0 %v366
    %v388 = vpop.xlane.xlu0 %387
    %389 = vadd.xlane.f32.xlu0 %v367
    %v390 = vpop.xlane.xlu0 %389
    %391 = vadd.xlane.f32.xlu0 %v368
    %v392 = vpop.xlane.xlu0 %391
    %393 = vadd.xlane.f32.xlu0 %v369
    %v394 = vpop.xlane.xlu0 %393
    %395 = vadd.xlane.f32.xlu0 %v370
    %v396 = vpop.xlane.xlu0 %395
    %397 = vadd.xlane.f32.xlu0 %v371
    %v398 = vpop.xlane.xlu0 %397
    %399 = vadd.xlane.f32.xlu0 %v372
    %v400 = vpop.xlane.xlu0 %399
    %401 = vadd.xlane.f32.xlu0 %v373
    %v402 = vpop.xlane.xlu0 %401
    %403 = vadd.xlane.f32.xlu0 %v374
    %v404 = vpop.xlane.xlu0 %403
    %405 = vadd.xlane.f32.xlu0 %v375
    %v406 = vpop.xlane.xlu0 %405
    %407 = vadd.xlane.f32.xlu0 %v376
    %v408 = vpop.xlane.xlu0 %407
    %v409 = vadd.f32 %v345, %v378
    %v410 = vadd.f32 %v346, %v380
    %v411 = vadd.f32 %v347, %v382
    %v412 = vadd.f32 %v348, %v384
    %v413 = vadd.f32 %v349, %v386
    %v414 = vadd.f32 %v350, %v388
    %v415 = vadd.f32 %v351, %v390
    %v416 = vadd.f32 %v352, %v392
    %v417 = vadd.f32 %v353, %v394
    %v418 = vadd.f32 %v354, %v396
    %v419 = vadd.f32 %v355, %v398
    %v420 = vadd.f32 %v356, %v400
    %v421 = vadd.f32 %v357, %v402
    %v422 = vadd.f32 %v358, %v404
    %v423 = vadd.f32 %v359, %v406
    %v424 = vadd.f32 %v360, %v408
    %vm425 = vcmask 7168
    %426 = vst.msk [vmem:[#allocation3] sm:$0xff] %vm425, %v409
    %427 = vst.msk [vmem:[#allocation3 + $0x8] sm:$0xff] %vm425, %v410
    %428 = vst.msk [vmem:[#allocation3 + $0x10] sm:$0xff] %vm425, %v411
    %429 = vst.msk [vmem:[#allocation3 + $0x18] sm:$0xff] %vm425, %v412
    %430 = vst.msk [vmem:[#allocation3 + $0x20] sm:$0xff] %vm425, %v413
    %431 = vst.msk [vmem:[#allocation3 + $0x28] sm:$0xff] %vm425, %v414
    %432 = vst.msk [vmem:[#allocation3 + $0x30] sm:$0xff] %vm425, %v415
    %433 = vst.msk [vmem:[#allocation3 + $0x38] sm:$0xff] %vm425, %v416
    %434 = vst.msk [vmem:[#allocation3 + $0x40] sm:$0xff] %vm425, %v417
    %435 = vst.msk [vmem:[#allocation3 + $0x48] sm:$0xff] %vm425, %v418
    %436 = vst.msk [vmem:[#allocation3 + $0x50] sm:$0xff] %vm425, %v419
    %437 = vst.msk [vmem:[#allocation3 + $0x58] sm:$0xff] %vm425, %v420
    %438 = vst.msk [vmem:[#allocation3 + $0x60] sm:$0xff] %vm425, %v421
    %439 = vst.msk [vmem:[#allocation3 + $0x68] sm:$0xff] %vm425, %v422
    %440 = vst.msk [vmem:[#allocation3 + $0x70] sm:$0xff] %vm425, %v423
    %441 = vst.msk [vmem:[#allocation3 + $0x78] sm:$0xff] %vm425, %v424
    %v442 = vld [vmem:[#allocation2] sm:$0xff]
    %v443 = vld [vmem:[#allocation2 + $0x8] sm:$0xff]
    %v444 = vld [vmem:[#allocation2 + $0x10] sm:$0xff]
    %v445 = vld [vmem:[#allocation2 + $0x18] sm:$0xff]
    %v446 = vld [vmem:[#allocation2 + $0x20] sm:$0xff]
    %v447 = vld [vmem:[#allocation2 + $0x28] sm:$0xff]
    %v448 = vld [vmem:[#allocation2 + $0x30] sm:$0xff]
    %v449 = vld [vmem:[#allocation2 + $0x38] sm:$0xff]
    %v450 = vld [vmem:[#allocation2 + $0x40] sm:$0xff]
    %v451 = vld [vmem:[#allocation2 + $0x48] sm:$0xff]
    %v452 = vld [vmem:[#allocation2 + $0x50] sm:$0xff]
    %v453 = vld [vmem:[#allocation2 + $0x58] sm:$0xff]
    %v454 = vld [vmem:[#allocation2 + $0x60] sm:$0xff]
    %v455 = vld [vmem:[#allocation2 + $0x68] sm:$0xff]
    %v456 = vld [vmem:[#allocation2 + $0x70] sm:$0xff]
    %v457 = vld [vmem:[#allocation2 + $0x78] sm:$0xff]
    %v458 = vld [vmem:[%s0] sm:$0xff]
    %v459 = vld [vmem:[%s0 + $0x8] sm:$0xff]
    %v460 = vld [vmem:[%s0 + $0x10] sm:$0xff]
    %v461 = vld [vmem:[%s0 + $0x18] sm:$0xff]
    %v462 = vld [vmem:[%s0 + $0x20] sm:$0xff]
    %v463 = vld [vmem:[%s0 + $0x28] sm:$0xff]
    %v464 = vld [vmem:[%s0 + $0x30] sm:$0xff]
    %v465 = vld [vmem:[%s0 + $0x38] sm:$0xff]
    %v466 = vld [vmem:[%s0 + $0x40] sm:$0xff]
    %v467 = vld [vmem:[%s0 + $0x48] sm:$0xff]
    %v468 = vld [vmem:[%s0 + $0x50] sm:$0xff]
    %v469 = vld [vmem:[%s0 + $0x58] sm:$0xff]
    %v470 = vld [vmem:[%s0 + $0x60] sm:$0xff]
    %v471 = vld [vmem:[%s0 + $0x68] sm:$0xff]
    %v472 = vld [vmem:[%s0 + $0x70] sm:$0xff]
    %v473 = vld [vmem:[%s0 + $0x78] sm:$0xff]
    %474 = vmatprep.subr.mxu0 0.0
    %475 = vmatpush1.msra.mxu0 %v458
    %476 = vmatprep.subr.mxu0 0.0
    %477 = vmatpush1.msra.mxu0 %v459
    %478 = vmatprep.subr.mxu0 0.0
    %479 = vmatpush1.msra.mxu0 %v460
    %480 = vmatprep.subr.mxu0 0.0
    %481 = vmatpush1.msra.mxu0 %v461
    %482 = vmatprep.subr.mxu0 0.0
    %483 = vmatpush1.msra.mxu0 %v462
    %484 = vmatprep.subr.mxu0 0.0
    %485 = vmatpush1.msra.mxu0 %v463
    %486 = vmatprep.subr.mxu0 0.0
    %487 = vmatpush1.msra.mxu0 %v464
    %488 = vmatprep.subr.mxu0 0.0
    %489 = vmatpush1.msra.mxu0 %v465
    %490 = vmatprep.subr.mxu0 0.0
    %491 = vmatpush1.msra.mxu0 %v466
    %492 = vmatprep.subr.mxu0 0.0
    %493 = vmatpush1.msra.mxu0 %v467
    %494 = vmatprep.subr.mxu0 0.0
    %495 = vmatpush1.msra.mxu0 %v468
    %496 = vmatprep.subr.mxu0 0.0
    %497 = vmatpush1.msra.mxu0 %v469
    %498 = vmatprep.subr.mxu0 0.0
    %499 = vmatpush1.msra.mxu0 %v470
    %500 = vmatprep.subr.mxu0 0.0
    %501 = vmatpush1.msra.mxu0 %v471
    %502 = vmatprep.subr.mxu0 0.0
    %503 = vmatpush1.msra.mxu0 %v472
    %504 = vmatprep.subr.mxu0 0.0
    %505 = vmatpush1.msra.mxu0 %v473
    %506 = vmatprep.subr.mxu0 0.0
    %507 = vmatpush1.msra.mxu0 0.0
    %508 = vmatprep.subr.mxu0 0.0
    %509 = vmatpush1.msra.mxu0 0.0
    %510 = vmatprep.subr.mxu0 0.0
    %511 = vmatpush1.msra.mxu0 0.0
    %512 = vmatprep.subr.mxu0 0.0
    %513 = vmatpush1.msra.mxu0 0.0
    %514 = vmatprep.subr.mxu0 0.0
    %515 = vmatpush1.msra.mxu0 0.0
    %516 = vmatprep.subr.mxu0 0.0
    %517 = vmatpush1.msra.mxu0 0.0
    %518 = vmatprep.subr.mxu0 0.0
    %519 = vmatpush1.msra.mxu0 0.0
    %520 = vmatprep.subr.mxu0 0.0
    %521 = vmatpush1.msra.mxu0 0.0
    %522 = vmatprep.subr.mxu0 0.0
    %523 = vmatpush1.msra.mxu0 0.0
    %524 = vmatprep.subr.mxu0 0.0
    %525 = vmatpush1.msra.mxu0 0.0
    %526 = vmatprep.subr.mxu0 0.0
    %527 = vmatpush1.msra.mxu0 0.0
    %528 = vmatprep.subr.mxu0 0.0
    %529 = vmatpush1.msra.mxu0 0.0
    %530 = vmatprep.subr.mxu0 0.0
    %531 = vmatpush1.msra.mxu0 0.0
    %532 = vmatprep.subr.mxu0 0.0
    %533 = vmatpush1.msra.mxu0 0.0
    %534 = vmatprep.subr.mxu0 0.0
    %535 = vmatpush1.msra.mxu0 0.0
    %536 = vmatprep.subr.mxu0 0.0
    %537 = vmatpush1.msra.mxu0 0.0
    %538 = vmatprep.mubr.f32.mxu0 0.0
    %539 = vmatmul.mubr.f32.gmra.mrb[0].mxu0 %v329
    %v540 = vpop.f32.mrb[0].mxu0
    %v541 = vadd.f32 0.0, %v540
    %v542 = vpop.f32.mrb[0].mxu0
    %543 = vmatprep.mubr.f32.mxu0 0.0
    %544 = vmatmul.mubr.f32.gmra.mrb[0].mxu0 %v330
    %v545 = vpop.f32.mrb[0].mxu0
    %v546 = vadd.f32 0.0, %v545
    %v547 = vpop.f32.mrb[0].mxu0
    %548 = vmatprep.mubr.f32.mxu0 0.0
    %549 = vmatmul.mubr.f32.gmra.mrb[0].mxu0 %v331
    %v550 = vpop.f32.mrb[0].mxu0
    %v551 = vadd.f32 0.0, %v550
    %v552 = vpop.f32.mrb[0].mxu0
    %553 = vmatprep.mubr.f32.mxu0 0.0
    %554 = vmatmul.mubr.f32.gmra.mrb[0].mxu0 %v332
    %v555 = vpop.f32.mrb[0].mxu0
    %v556 = vadd.f32 0.0, %v555
    %v557 = vpop.f32.mrb[0].mxu0
    %558 = vmatprep.mubr.f32.mxu0 0.0
    %559 = vmatmul.mubr.f32.gmra.mrb[0].mxu0 %v333
    %v560 = vpop.f32.mrb[0].mxu0
    %v561 = vadd.f32 0.0, %v560
    %v562 = vpop.f32.mrb[0].mxu0
    %563 = vmatprep.mubr.f32.mxu0 0.0
    %564 = vmatmul.mubr.f32.gmra.mrb[0].mxu0 %v334
    %v565 = vpop.f32.mrb[0].mxu0
    %v566 = vadd.f32 0.0, %v565
    %v567 = vpop.f32.mrb[0].mxu0
    %568 = vmatprep.mubr.f32.mxu0 0.0
    %569 = vmatmul.mubr.f32.gmra.mrb[0].mxu0 %v335
    %v570 = vpop.f32.mrb[0].mxu0
    %v571 = vadd.f32 0.0, %v570
    %v572 = vpop.f32.mrb[0].mxu0
    %573 = vmatprep.mubr.f32.mxu0 0.0
    %574 = vmatmul.mubr.f32.gmra.mrb[0].mxu0 %v336
    %v575 = vpop.f32.mrb[0].mxu0
    %v576 = vadd.f32 0.0, %v575
    %v577 = vpop.f32.mrb[0].mxu0
    %578 = vmatprep.mubr.f32.mxu0 0.0
    %579 = vmatmul.mubr.f32.gmra.mrb[0].mxu0 %v337
    %v580 = vpop.f32.mrb[0].mxu0
    %v581 = vadd.f32 0.0, %v580
    %v582 = vpop.f32.mrb[0].mxu0
    %583 = vmatprep.mubr.f32.mxu0 0.0
    %584 = vmatmul.mubr.f32.gmra.mrb[0].mxu0 %v338
    %v585 = vpop.f32.mrb[0].mxu0
    %v586 = vadd.f32 0.0, %v585
    %v587 = vpop.f32.mrb[0].mxu0
    %588 = vmatprep.mubr.f32.mxu0 0.0
    %589 = vmatmul.mubr.f32.gmra.mrb[0].mxu0 %v339
    %v590 = vpop.f32.mrb[0].mxu0
    %v591 = vadd.f32 0.0, %v590
    %v592 = vpop.f32.mrb[0].mxu0
    %593 = vmatprep.mubr.f32.mxu0 0.0
    %594 = vmatmul.mubr.f32.gmra.mrb[0].mxu0 %v340
    %v595 = vpop.f32.mrb[0].mxu0
    %v596 = vadd.f32 0.0, %v595
    %v597 = vpop.f32.mrb[0].mxu0
    %598 = vmatprep.mubr.f32.mxu0 0.0
    %599 = vmatmul.mubr.f32.gmra.mrb[0].mxu0 %v341
    %v600 = vpop.f32.mrb[0].mxu0
    %v601 = vadd.f32 0.0, %v600
    %v602 = vpop.f32.mrb[0].mxu0
    %603 = vmatprep.mubr.f32.mxu0 0.0
    %604 = vmatmul.mubr.f32.gmra.mrb[0].mxu0 %v342
    %v605 = vpop.f32.mrb[0].mxu0
    %v606 = vadd.f32 0.0, %v605
    %v607 = vpop.f32.mrb[0].mxu0
    %608 = vmatprep.mubr.f32.mxu0 0.0
    %609 = vmatmul.mubr.f32.gmra.mrb[0].mxu0 %v343
    %v610 = vpop.f32.mrb[0].mxu0
    %v611 = vadd.f32 0.0, %v610
    %v612 = vpop.f32.mrb[0].mxu0
    %613 = vmatprep.mubr.f32.mxu0 0.0
    %614 = vmatmul.mubr.f32.gmra.mrb[0].mxu0 %v344
    %v615 = vpop.f32.mrb[0].mxu0
    %v616 = vadd.f32 0.0, %v615
    %v617 = vpop.f32.mrb[0].mxu0
    %618 = vdwg.mxu0
    %v619 = vadd.f32 %v442, %v541
    %v620 = vadd.f32 %v443, %v546
    %v621 = vadd.f32 %v444, %v551
    %v622 = vadd.f32 %v445, %v556
    %v623 = vadd.f32 %v446, %v561
    %v624 = vadd.f32 %v447, %v566
    %v625 = vadd.f32 %v448, %v571
    %v626 = vadd.f32 %v449, %v576
    %v627 = vadd.f32 %v450, %v581
    %v628 = vadd.f32 %v451, %v586
    %v629 = vadd.f32 %v452, %v591
    %v630 = vadd.f32 %v453, %v596
    %v631 = vadd.f32 %v454, %v601
    %v632 = vadd.f32 %v455, %v606
    %v633 = vadd.f32 %v456, %v611
    %v634 = vadd.f32 %v457, %v616
    %635 = vst [vmem:[#allocation2] sm:$0xff] %v619
    %636 = vst [vmem:[#allocation2 + $0x8] sm:$0xff] %v620
    %637 = vst [vmem:[#allocation2 + $0x10] sm:$0xff] %v621
    %638 = vst [vmem:[#allocation2 + $0x18] sm:$0xff] %v622
    %639 = vst [vmem:[#allocation2 + $0x20] sm:$0xff] %v623
    %640 = vst [vmem:[#allocation2 + $0x28] sm:$0xff] %v624
    %641 = vst [vmem:[#allocation2 + $0x30] sm:$0xff] %v625
    %642 = vst [vmem:[#allocation2 + $0x38] sm:$0xff] %v626
    %643 = vst [vmem:[#allocation2 + $0x40] sm:$0xff] %v627
    %644 = vst [vmem:[#allocation2 + $0x48] sm:$0xff] %v628
    %645 = vst [vmem:[#allocation2 + $0x50] sm:$0xff] %v629
    %646 = vst [vmem:[#allocation2 + $0x58] sm:$0xff] %v630
    %647 = vst [vmem:[#allocation2 + $0x60] sm:$0xff] %v631
    %648 = vst [vmem:[#allocation2 + $0x68] sm:$0xff] %v632
    %649 = vst [vmem:[#allocation2 + $0x70] sm:$0xff] %v633
    %650 = vst [vmem:[#allocation2 + $0x78] sm:$0xff] %v634
    // Predicated region
    $region42: #{tpu_custom_call.1} parent=1 // pred_check
      %p651 = pneg %p65
    $region43: #{tpu_custom_call.1} parent=1 // pred_check_branch
      %653 = sbr.rel (%p651) target = $region45
    $region44: #{tpu_custom_call.1} parent=1 // pred_region
      %v654 = vld [vmem:[#allocation3] sm:$0xff]
      %v655 = vld [vmem:[#allocation3 + $0x8] sm:$0xff]
      %v656 = vld [vmem:[#allocation3 + $0x10] sm:$0xff]
      %v657 = vld [vmem:[#allocation3 + $0x18] sm:$0xff]
      %v658 = vld [vmem:[#allocation3 + $0x20] sm:$0xff]
      %v659 = vld [vmem:[#allocation3 + $0x28] sm:$0xff]
      %v660 = vld [vmem:[#allocation3 + $0x30] sm:$0xff]
      %v661 = vld [vmem:[#allocation3 + $0x38] sm:$0xff]
      %v662 = vld [vmem:[#allocation3 + $0x40] sm:$0xff]
      %v663 = vld [vmem:[#allocation3 + $0x48] sm:$0xff]
      %v664 = vld [vmem:[#allocation3 + $0x50] sm:$0xff]
      %v665 = vld [vmem:[#allocation3 + $0x58] sm:$0xff]
      %v666 = vld [vmem:[#allocation3 + $0x60] sm:$0xff]
      %v667 = vld [vmem:[#allocation3 + $0x68] sm:$0xff]
      %v668 = vld [vmem:[#allocation3 + $0x70] sm:$0xff]
      %v669 = vld [vmem:[#allocation3 + $0x78] sm:$0xff]
      %v670 = vmax.f32 %v654, 1e-12
      %v671 = vmax.f32 %v655, 1e-12
      %v672 = vmax.f32 %v656, 1e-12
      %v673 = vmax.f32 %v657, 1e-12
      %v674 = vmax.f32 %v658, 1e-12
      %v675 = vmax.f32 %v659, 1e-12
      %v676 = vmax.f32 %v660, 1e-12
      %v677 = vmax.f32 %v661, 1e-12
      %v678 = vmax.f32 %v662, 1e-12
      %v679 = vmax.f32 %v663, 1e-12
      %v680 = vmax.f32 %v664, 1e-12
      %v681 = vmax.f32 %v665, 1e-12
      %v682 = vmax.f32 %v666, 1e-12
      %v683 = vmax.f32 %v667, 1e-12
      %v684 = vmax.f32 %v668, 1e-12
      %v685 = vmax.f32 %v669, 1e-12
      %v686 = vld [vmem:[#allocation2] sm:$0xff]
      %v687 = vld [vmem:[#allocation2 + $0x8] sm:$0xff]
      %v688 = vld [vmem:[#allocation2 + $0x10] sm:$0xff]
      %v689 = vld [vmem:[#allocation2 + $0x18] sm:$0xff]
      %v690 = vld [vmem:[#allocation2 + $0x20] sm:$0xff]
      %v691 = vld [vmem:[#allocation2 + $0x28] sm:$0xff]
      %v692 = vld [vmem:[#allocation2 + $0x30] sm:$0xff]
      %v693 = vld [vmem:[#allocation2 + $0x38] sm:$0xff]
      %v694 = vld [vmem:[#allocation2 + $0x40] sm:$0xff]
      %v695 = vld [vmem:[#allocation2 + $0x48] sm:$0xff]
      %v696 = vld [vmem:[#allocation2 + $0x50] sm:$0xff]
      %v697 = vld [vmem:[#allocation2 + $0x58] sm:$0xff]
      %v698 = vld [vmem:[#allocation2 + $0x60] sm:$0xff]
      %v699 = vld [vmem:[#allocation2 + $0x68] sm:$0xff]
      %v700 = vld [vmem:[#allocation2 + $0x70] sm:$0xff]
      %v701 = vld [vmem:[#allocation2 + $0x78] sm:$0xff]
      %703 = vset.pattern.permute.xlu0 0
      %704 = vperm.xlu0 %703, %v670
      %v705 = vpop.permute.xlu0 %704
      %708 = vset.pattern.permute.xlu0 0
      %709 = vperm.xlu0 %708, %v671
      %v710 = vpop.permute.xlu0 %709
      %713 = vset.pattern.permute.xlu0 0
      %714 = vperm.xlu0 %713, %v672
      %v715 = vpop.permute.xlu0 %714
      %718 = vset.pattern.permute.xlu0 0
      %719 = vperm.xlu0 %718, %v673
      %v720 = vpop.permute.xlu0 %719
      %723 = vset.pattern.permute.xlu0 0
      %724 = vperm.xlu0 %723, %v674
      %v725 = vpop.permute.xlu0 %724
      %728 = vset.pattern.permute.xlu0 0
      %729 = vperm.xlu0 %728, %v675
      %v730 = vpop.permute.xlu0 %729
      %733 = vset.pattern.permute.xlu0 0
      %734 = vperm.xlu0 %733, %v676
      %v735 = vpop.permute.xlu0 %734
      %738 = vset.pattern.permute.xlu0 0
      %739 = vperm.xlu0 %738, %v677
      %v740 = vpop.permute.xlu0 %739
      %743 = vset.pattern.permute.xlu0 0
      %744 = vperm.xlu0 %743, %v678
      %v745 = vpop.permute.xlu0 %744
      %748 = vset.pattern.permute.xlu0 0
      %749 = vperm.xlu0 %748, %v679
      %v750 = vpop.permute.xlu0 %749
      %753 = vset.pattern.permute.xlu0 0
      %754 = vperm.xlu0 %753, %v680
      %v755 = vpop.permute.xlu0 %754
      %758 = vset.pattern.permute.xlu0 0
      %759 = vperm.xlu0 %758, %v681
      %v760 = vpop.permute.xlu0 %759
      %763 = vset.pattern.permute.xlu0 0
      %764 = vperm.xlu0 %763, %v682
      %v765 = vpop.permute.xlu0 %764
      %768 = vset.pattern.permute.xlu0 0
      %769 = vperm.xlu0 %768, %v683
      %v770 = vpop.permute.xlu0 %769
      %773 = vset.pattern.permute.xlu0 0
      %774 = vperm.xlu0 %773, %v684
      %v775 = vpop.permute.xlu0 %774
      %778 = vset.pattern.permute.xlu0 0
      %779 = vperm.xlu0 %778, %v685
      %v780 = vpop.permute.xlu0 %779
      %v782 = vrcp.pop %v705
      %v783 = vmul.f32 %v686, %v782
      %v784 = vrcp.pop %v710
      %v785 = vmul.f32 %v687, %v784
      %v786 = vrcp.pop %v715
      %v787 = vmul.f32 %v688, %v786
      %v788 = vrcp.pop %v720
      %v789 = vmul.f32 %v689, %v788
      %v790 = vrcp.pop %v725
      %v791 = vmul.f32 %v690, %v790
      %v792 = vrcp.pop %v730
      %v793 = vmul.f32 %v691, %v792
      %v794 = vrcp.pop %v735
      %v795 = vmul.f32 %v692, %v794
      %v796 = vrcp.pop %v740
      %v797 = vmul.f32 %v693, %v796
      %v798 = vrcp.pop %v745
      %v799 = vmul.f32 %v694, %v798
      %v800 = vrcp.pop %v750
      %v801 = vmul.f32 %v695, %v800
      %v802 = vrcp.pop %v755
      %v803 = vmul.f32 %v696, %v802
      %v804 = vrcp.pop %v760
      %v805 = vmul.f32 %v697, %v804
      %v806 = vrcp.pop %v765
      %v807 = vmul.f32 %v698, %v806
      %v808 = vrcp.pop %v770
      %v809 = vmul.f32 %v699, %v808
      %v810 = vrcp.pop %v775
      %v811 = vmul.f32 %v700, %v810
      %v812 = vrcp.pop %v780
      %v813 = vmul.f32 %v701, %v812
      %v814 = vmul.f32 %v783, 0.9
      %v815 = vmul.f32 %v785, 0.9
      %v816 = vmul.f32 %v787, 0.9
      %v817 = vmul.f32 %v789, 0.9
      %v818 = vmul.f32 %v791, 0.9
      %v819 = vmul.f32 %v793, 0.9
      %v820 = vmul.f32 %v795, 0.9
      %v821 = vmul.f32 %v797, 0.9
      %v822 = vmul.f32 %v799, 0.9
      %v823 = vmul.f32 %v801, 0.9
      %v824 = vmul.f32 %v803, 0.9
      %v825 = vmul.f32 %v805, 0.9
      %v826 = vmul.f32 %v807, 0.9
      %v827 = vmul.f32 %v809, 0.9
      %v828 = vmul.f32 %v811, 0.9
      %v829 = vmul.f32 %v813, 0.9
      %v830 = vld [vmem:[#allocation7] sm:$0xff]
      %v831 = vld [vmem:[#allocation7 + $0x8] sm:$0xff]
      %v832 = vld [vmem:[#allocation7 + $0x10] sm:$0xff]
      %v833 = vld [vmem:[#allocation7 + $0x18] sm:$0xff]
      %v834 = vld [vmem:[#allocation7 + $0x20] sm:$0xff]
      %v835 = vld [vmem:[#allocation7 + $0x28] sm:$0xff]
      %v836 = vld [vmem:[#allocation7 + $0x30] sm:$0xff]
      %v837 = vld [vmem:[#allocation7 + $0x38] sm:$0xff]
      %v838 = vld [vmem:[#allocation7 + $0x40] sm:$0xff]
      %v839 = vld [vmem:[#allocation7 + $0x48] sm:$0xff]
      %v840 = vld [vmem:[#allocation7 + $0x50] sm:$0xff]
      %v841 = vld [vmem:[#allocation7 + $0x58] sm:$0xff]
      %v842 = vld [vmem:[#allocation7 + $0x60] sm:$0xff]
      %v843 = vld [vmem:[#allocation7 + $0x68] sm:$0xff]
      %v844 = vld [vmem:[#allocation7 + $0x70] sm:$0xff]
      %v845 = vld [vmem:[#allocation7 + $0x78] sm:$0xff]
      %v846 = vmul.f32 %v830, 0.1
      %v847 = vmul.f32 %v831, 0.1
      %v848 = vmul.f32 %v832, 0.1
      %v849 = vmul.f32 %v833, 0.1
      %v850 = vmul.f32 %v834, 0.1
      %v851 = vmul.f32 %v835, 0.1
      %v852 = vmul.f32 %v836, 0.1
      %v853 = vmul.f32 %v837, 0.1
      %v854 = vmul.f32 %v838, 0.1
      %v855 = vmul.f32 %v839, 0.1
      %v856 = vmul.f32 %v840, 0.1
      %v857 = vmul.f32 %v841, 0.1
      %v858 = vmul.f32 %v842, 0.1
      %v859 = vmul.f32 %v843, 0.1
      %v860 = vmul.f32 %v844, 0.1
      %v861 = vmul.f32 %v845, 0.1
      %v862 = vadd.f32 %v814, %v846
      %v863 = vadd.f32 %v815, %v847
      %v864 = vadd.f32 %v816, %v848
      %v865 = vadd.f32 %v817, %v849
      %v866 = vadd.f32 %v818, %v850
      %v867 = vadd.f32 %v819, %v851
      %v868 = vadd.f32 %v820, %v852
      %v869 = vadd.f32 %v821, %v853
      %v870 = vadd.f32 %v822, %v854
      %v871 = vadd.f32 %v823, %v855
      %v872 = vadd.f32 %v824, %v856
      %v873 = vadd.f32 %v825, %v857
      %v874 = vadd.f32 %v826, %v858
      %v875 = vadd.f32 %v827, %v859
      %v876 = vadd.f32 %v828, %v860
      %v877 = vadd.f32 %v829, %v861
      %878 = vst [vmem:[#allocation10] sm:$0xff] %v862
      %879 = vst [vmem:[#allocation10 + $0x8] sm:$0xff] %v863
      %880 = vst [vmem:[#allocation10 + $0x10] sm:$0xff] %v864
      %881 = vst [vmem:[#allocation10 + $0x18] sm:$0xff] %v865
      %882 = vst [vmem:[#allocation10 + $0x20] sm:$0xff] %v866
      %883 = vst [vmem:[#allocation10 + $0x28] sm:$0xff] %v867
      %884 = vst [vmem:[#allocation10 + $0x30] sm:$0xff] %v868
      %885 = vst [vmem:[#allocation10 + $0x38] sm:$0xff] %v869
      %886 = vst [vmem:[#allocation10 + $0x40] sm:$0xff] %v870
      %887 = vst [vmem:[#allocation10 + $0x48] sm:$0xff] %v871
      %888 = vst [vmem:[#allocation10 + $0x50] sm:$0xff] %v872
      %889 = vst [vmem:[#allocation10 + $0x58] sm:$0xff] %v873
      %890 = vst [vmem:[#allocation10 + $0x60] sm:$0xff] %v874
      %891 = vst [vmem:[#allocation10 + $0x68] sm:$0xff] %v875
      %892 = vst [vmem:[#allocation10 + $0x70] sm:$0xff] %v876
      %893 = vst [vmem:[#allocation10 + $0x78] sm:$0xff] %v877
    $region45: #{tpu_custom_call.1} parent=1 // pred_fallthru
      _
    // Predicated region
    $region46: #{tpu_custom_call.1} parent=1 // pred_check
      _
    $region47: #{tpu_custom_call.1} parent=1 // pred_check_branch
      %895 = sbr.rel (0) target = $region49
    $region48: #{tpu_custom_call.1} parent=1 // pred_region
      %s897 = ssub.s32 2048, 2048
      %898 = vsyncadd [#allocation6], %s897
      %s899 = sshll.u32 [#allocation10], 4
      %s900 = int_to_ptr.vmem [resolvable:$true] %s899
      %905 = dma.vmem_to_hbm [thread:$0]  %s900, 2048, %s6, [#allocation6], 128, 128, 8
    $region49: #{tpu_custom_call.1} parent=1 // pred_fallthru
      _
    // Predicated region
    $region50: #{tpu_custom_call.1} parent=1 // pred_check
      _
    $region51: #{tpu_custom_call.1} parent=1 // pred_check_branch
      %907 = sbr.rel (0) target = $region53
    $region52: #{tpu_custom_call.1} parent=1 // pred_region
      %908 = dma.done [#allocation6], 2048
    $region53: #{tpu_custom_call.1} parent=1 // pred_fallthru
      _
    %909 = vsyncpa [#allocation5], 1
    %910 = vsyncpa [#allocation8], 1
    %911 = vsyncpa [#allocation6], 1

</llo_original>
